<compile_context>
chip_gen: v7x
topology: tpu7x:2x2x1
jax: 0.10.0
libtpu: 0.0.40
codegen_flags: <defaults>
</compile_context>

<pallas_src>
import functools

import jax
import jax.numpy as jnp
from jax import lax
from jax.experimental import pallas as pl
from jax.experimental.pallas import tpu as pltpu


def _round_up(v, m):
    return (v + m - 1) // m * m


# ---------------------------------------------------------------------------
# Pallas kernel: single fused conv-as-matmul + LSTM gate math (transposed)
# ---------------------------------------------------------------------------
def _convlstm_gates_kernel(colT_ref, wT_ref, b_ref, cT_ref, chT_ref, ccT_ref,
                           *, Ch):
    # colT_ref: (Kc_pad, TP)   bf16  merged im2col columns ([x | h] patches)^T
    # wT_ref:   (4*Ch, Kc_pad) bf16  stacked weights^T, gate order [i, f, o, c]
    # b_ref:    (4*Ch, 1)      f32   stacked x-path conv biases (h-path: none)
    # cT_ref:   (Ch, TP)       f32   previous cell state (channels-major)
    # chT_ref / ccT_ref: (Ch, TP) f32 outputs
    gates = jnp.dot(wT_ref[...], colT_ref[...],
                    preferred_element_type=jnp.float32)        # (4*Ch, TP) MXU
    gates = gates + b_ref[...]

    sig = jax.nn.sigmoid(gates[0:3 * Ch, :])    # one bulk sigmoid: i, f, o
    cg = jnp.tanh(gates[3 * Ch:4 * Ch, :])      # one bulk tanh: candidate

    ci = sig[0 * Ch:1 * Ch, :]
    cf = sig[1 * Ch:2 * Ch, :]
    co = sig[2 * Ch:3 * Ch, :]

    cc = cf * cT_ref[...] + ci * cg
    chT_ref[...] = co * jnp.tanh(cc)
    ccT_ref[...] = cc


# ---------------------------------------------------------------------------
# Glue: NCHW <-> channels-major flat layout, im2col, weight repack
# ---------------------------------------------------------------------------
def _im2col(x_nhwc, K, pad):
    B, H, W, C = x_nhwc.shape
    xp = jnp.pad(x_nhwc, ((0, 0), (pad, pad), (pad, pad), (0, 0)))
    cols = []
    for dy in range(K):
        for dx in range(K):
            cols.append(xp[:, dy:dy + H, dx:dx + W, :])
    col = jnp.concatenate(cols, axis=-1)          # (B, H, W, K*K*C)
    return col.reshape(B * H * W, K * K * C)


def _split_gates(a, Ch):
    return (a[..., 0 * Ch:1 * Ch], a[..., 1 * Ch:2 * Ch],
            a[..., 2 * Ch:3 * Ch], a[..., 3 * Ch:4 * Ch])


def convlstm_cell_forward(x_nchw, h_nchw, c_nchw, wx, wh, bx, kernel_size,
                          tp=512):
    """ConvLSTMCell.forward (version_simple). Returns (ch, cc) in NCHW.

    wx: (K, K, Cin, 4*Ch) HWIO, gate order [i, f, c, o] along the last axis.
    wh: (K, K, Ch,  4*Ch) HWIO, same order (h-path convs have no bias).
    bx: (4*Ch,) x-path conv biases, gate order [i, f, c, o].
    """
    B, Cin, H, W = x_nchw.shape
    Ch = h_nchw.shape[1]
    K = kernel_size
    pad = (K - 1) // 2
    P = B * H * W
    Kc = K * K * (Cin + Ch)
    Kc_pad = _round_up(Kc, 128)                       # MXU/sublane-friendly

    TP = max(128, min(_round_up(tp, 128), _round_up(P, 128)))
    P_pad = _round_up(P, TP)
    grid = (P_pad // TP,)

    # --- wrapper-side layout / patch extraction (runs once per call) --------
    # TODO(synk): for a multi-timestep ConvLSTM, keep h/c in the (Ch, P)
    # layout across steps and fuse the h-path im2col into the kernel with a
    # halo'd spatial tiling, so the per-step transposes and the 9x h-path
    # inflation are not paid every step.
    x_nhwc = jnp.transpose(x_nchw, (0, 2, 3, 1)).astype(jnp.bfloat16)
    h_nhwc = jnp.transpose(h_nchw, (0, 2, 3, 1)).astype(jnp.bfloat16)
    cT = jnp.transpose(c_nchw, (0, 2, 3, 1)).astype(jnp.float32)
    cT = cT.reshape(P, Ch).T                                      # (Ch, P)

    xcol = _im2col(x_nhwc, K, pad)                                # (P, K*K*Cin)
    hcol = _im2col(h_nhwc, K, pad)                                # (P, K*K*Ch)
    colT = jnp.concatenate([xcol, hcol], axis=-1).T               # (Kc, P)
    colT = jnp.pad(colT, ((0, Kc_pad - Kc), (0, P_pad - P)))

    # Repack gate order [i, f, c, o] -> [i, f, o, c] so the sigmoid covers one
    # contiguous 3*Ch row block and the tanh covers the last Ch rows.
    xi, xf, xc, xo = _split_gates(wx.reshape(K * K * Cin, 4 * Ch), Ch)
    hi, hf, hc, ho = _split_gates(wh.reshape(K * K * Ch, 4 * Ch), Ch)
    bi, bfg, bc, bo = _split_gates(bx, Ch)
    w_x = jnp.concatenate([xi, xf, xo, xc], axis=-1)              # (K*K*Cin, 4Ch)
    w_h = jnp.concatenate([hi, hf, ho, hc], axis=-1)              # (K*K*Ch,  4Ch)
    wT = jnp.concatenate([w_x, w_h], axis=0).T                    # (4*Ch, Kc)
    wT = jnp.pad(wT, ((0, 0), (0, Kc_pad - Kc))).astype(jnp.bfloat16)
    b_col = jnp.concatenate([bi, bfg, bo, bc]).reshape(4 * Ch, 1)
    b_col = b_col.astype(jnp.float32)

    cT_pad = jnp.pad(cT, ((0, 0), (0, P_pad - P)))

    kernel = functools.partial(_convlstm_gates_kernel, Ch=Ch)
    chT, ccT = pl.pallas_call(
        kernel,
        out_shape=(jax.ShapeDtypeStruct((Ch, P_pad), jnp.float32),
                   jax.ShapeDtypeStruct((Ch, P_pad), jnp.float32)),
        grid_spec=pltpu.PrefetchScalarGridSpec(
            num_scalar_prefetch=0,
            grid=grid,
            in_specs=[
                pl.BlockSpec((Kc_pad, TP), lambda i: (0, i)),      # im2col tile
                pl.BlockSpec((4 * Ch, Kc_pad), lambda i: (0, 0)),  # resident W
                pl.BlockSpec((4 * Ch, 1), lambda i: (0, 0)),       # resident b
                pl.BlockSpec((Ch, TP), lambda i: (0, i)),          # prev cell
            ],
            out_specs=(
                pl.BlockSpec((Ch, TP), lambda i: (0, i)),
                pl.BlockSpec((Ch, TP), lambda i: (0, i)),
            ),
        ),
        compiler_params=pltpu.CompilerParams(
            dimension_semantics=("parallel",),    # shard rows over v7x's 2 TCs
            vmem_limit_bytes=48 << 20,            # headroom under v7x's 64 MiB
        ),
    )(colT.astype(jnp.bfloat16), wT, b_col, cT_pad)

    chT = chT[:, :P]
    ccT = ccT[:, :P]
    ch_nchw = jnp.transpose(chT.reshape(Ch, B, H, W), (1, 0, 2, 3))
    cc_nchw = jnp.transpose(ccT.reshape(Ch, B, H, W), (1, 0, 2, 3))
    return ch_nchw, cc_nchw


# ---------------------------------------------------------------------------
# Pure-JAX reference (f32 lax.conv) for correctness check
# ---------------------------------------------------------------------------
def _reference(x_nchw, h_nchw, c_nchw, wx, wh, bx, K):
    pad = (K - 1) // 2
    dn = ('NHWC', 'HWIO', 'NHWC')
    x = jnp.transpose(x_nchw, (0, 2, 3, 1)).astype(jnp.float32)
    h = jnp.transpose(h_nchw, (0, 2, 3, 1)).astype(jnp.float32)
    c = jnp.transpose(c_nchw, (0, 2, 3, 1)).astype(jnp.float32)
    Ch = h.shape[-1]
    gx = lax.conv_general_dilated(x, wx, (1, 1), [(pad, pad), (pad, pad)],
                                  dimension_numbers=dn) + bx
    gh = lax.conv_general_dilated(h, wh, (1, 1), [(pad, pad), (pad, pad)],
                                  dimension_numbers=dn)
    g = gx + gh
    ci = jax.nn.sigmoid(g[..., 0 * Ch:1 * Ch])
    cf = jax.nn.sigmoid(g[..., 1 * Ch:2 * Ch])
    cg = jnp.tanh(g[..., 2 * Ch:3 * Ch])
    co = jax.nn.sigmoid(g[..., 3 * Ch:4 * Ch])
    cc = cf * c + ci * cg
    ch = co * jnp.tanh(cc)
    return (jnp.transpose(ch, (0, 3, 1, 2)), jnp.transpose(cc, (0, 3, 1, 2)))


# ---------------------------------------------------------------------------
# Main
# ---------------------------------------------------------------------------
if __name__ == "__main__":
    # Module hyper-params (hidden_channels % 2 == 0 as asserted in __init__)
    B, Cin, Ch, H, W, K = 2, 4, 32, 16, 16, 3

    key = jax.random.PRNGKey(0)
    kx, kh, kc, kwx, kwh, kbx = jax.random.split(key, 6)

    # Deterministic synthetic parameters (HWIO layout; gate order i,f,c,o).
    wx = 0.1 * jax.random.normal(kwx, (K, K, Cin, 4 * Ch), jnp.float32)
    wh = 0.1 * jax.random.normal(kwh, (K, K, Ch, 4 * Ch), jnp.float32)
    bx = 0.1 * jax.random.normal(kbx, (4 * Ch,), jnp.float32)

    # Inputs in PyTorch NCHW convention.
    x = jax.random.normal(kx, (B, Cin, H, W), jnp.float32)
    h = jax.random.normal(kh, (B, Ch, H, W), jnp.float32)
    c = jax.random.normal(kc, (B, Ch, H, W), jnp.float32)

    # tp=128 -> grid of 4 steps at this small size, exercising the pipeline.
    ch_out, cc_out = convlstm_cell_forward(x, h, c, wx, wh, bx, K, tp=128)
    jax.block_until_ready((ch_out, cc_out))

    ch_ref, cc_ref = _reference(x, h, c, wx, wh, bx, K)
    # bf16 MXU inputs with f32 accumulation -> looser tolerance than pure f32.
    assert jnp.allclose(ch_out, ch_ref, atol=5e-2, rtol=5e-2), "ch mismatch"
    assert jnp.allclose(cc_out, cc_ref, atol=5e-2, rtol=5e-2), "cc mismatch"

    # TODO(synk): only 'version_simple' is implemented; the peephole variant
    # (Wci/Wcf/Wco) is never initialized in the reference __init__ either.
    print("KERNEL_OK")
</pallas_src>

<mosaic_0001>
module attributes {stable_mosaic.version = 11 : i64} {
  func.func @_convlstm_gates_kernel(%arg0: i32, %arg1: memref<384x128xbf16, #tpu.memory_space<vmem>>, %arg2: memref<128x384xbf16, #tpu.memory_space<vmem>>, %arg3: memref<128x1xf32, #tpu.memory_space<vmem>>, %arg4: memref<32x128xf32, #tpu.memory_space<vmem>>, %arg5: memref<32x128xf32, #tpu.memory_space<vmem>>, %arg6: memref<32x128xf32, #tpu.memory_space<vmem>>) attributes {dimension_semantics = [#tpu.dimension_semantics<parallel>], iteration_bounds = array<i64: 4>, scalar_prefetch = 0 : i64, scratch_operands = 0 : i64, tpu.core_type = #tpu.core_type<tc>, window_params = [{transform_indices = @transform_0, window_bounds = array<i64: 384, 128>}, {pipeline_mode = #tpu.pipeline_mode<synchronous>, transform_indices = @transform_1, window_bounds = array<i64: 128, 384>}, {pipeline_mode = #tpu.pipeline_mode<synchronous>, transform_indices = @transform_2, window_bounds = array<i64: 128, 1>}, {transform_indices = @transform_3, window_bounds = array<i64: 32, 128>}, {transform_indices = @transform_4, window_bounds = array<i64: 32, 128>}, {transform_indices = @transform_5, window_bounds = array<i64: 32, 128>}]} {
    %c0 = arith.constant 0 : index
    %c0_0 = arith.constant 0 : index
    %0 = vector.load %arg2[%c0, %c0_0] : memref<128x384xbf16, #tpu.memory_space<vmem>>, vector<128x384xbf16>
    %c0_1 = arith.constant 0 : index
    %c0_2 = arith.constant 0 : index
    %1 = vector.load %arg1[%c0_1, %c0_2] : memref<384x128xbf16, #tpu.memory_space<vmem>>, vector<384x128xbf16>
    %cst = arith.constant dense<0.000000e+00> : vector<128x128xf32>
    %2 = tpu.matmul %0, %1, %cst {dimension_numbers = #tpu.dot_dimension_numbers<[1], [0], [0], [1], [0, 0, 1, 1], [], []>} : vector<128x384xbf16>, vector<384x128xbf16>, vector<128x128xf32> -> vector<128x128xf32>
    %c0_3 = arith.constant 0 : index
    %c0_4 = arith.constant 0 : index
    %3 = vector.load %arg3[%c0_3, %c0_4] : memref<128x1xf32, #tpu.memory_space<vmem>>, vector<128x1xf32>
    %4 = vector.broadcast %3 : vector<128x1xf32> to vector<128x128xf32>
    %5 = arith.addf %2, %4 : vector<128x128xf32>
    %6 = vector.extract_strided_slice %5 {offsets = [0, 0], sizes = [96, 128], strides = [1, 1]} : vector<128x128xf32> to vector<96x128xf32>
    %7 = arith.negf %6 : vector<96x128xf32>
    %8 = math.exp %7 : vector<96x128xf32>
    %cst_5 = arith.constant 1.000000e+00 : f32
    %9 = vector.broadcast %cst_5 : f32 to vector<96x128xf32>
    %10 = arith.addf %9, %8 : vector<96x128xf32>
    %11 = arith.divf %9, %10 : vector<96x128xf32>
    %12 = vector.extract_strided_slice %5 {offsets = [96, 0], sizes = [32, 128], strides = [1, 1]} : vector<128x128xf32> to vector<32x128xf32>
    %13 = math.tanh %12 : vector<32x128xf32>
    %14 = vector.extract_strided_slice %11 {offsets = [0, 0], sizes = [32, 128], strides = [1, 1]} : vector<96x128xf32> to vector<32x128xf32>
    %15 = vector.extract_strided_slice %11 {offsets = [32, 0], sizes = [32, 128], strides = [1, 1]} : vector<96x128xf32> to vector<32x128xf32>
    %16 = vector.extract_strided_slice %11 {offsets = [64, 0], sizes = [32, 128], strides = [1, 1]} : vector<96x128xf32> to vector<32x128xf32>
    %c0_6 = arith.constant 0 : index
    %c0_7 = arith.constant 0 : index
    %17 = vector.load %arg4[%c0_6, %c0_7] : memref<32x128xf32, #tpu.memory_space<vmem>>, vector<32x128xf32>
    %18 = arith.mulf %15, %17 : vector<32x128xf32>
    %19 = arith.mulf %14, %13 : vector<32x128xf32>
    %20 = arith.addf %18, %19 : vector<32x128xf32>
    %21 = math.tanh %20 : vector<32x128xf32>
    %22 = arith.mulf %16, %21 : vector<32x128xf32>
    %c0_8 = arith.constant 0 : index
    %c0_9 = arith.constant 0 : index
    %23 = vector.load %arg5[%c0_8, %c0_9] : memref<32x128xf32, #tpu.memory_space<vmem>>, vector<32x128xf32>
    tpu.vector_store %arg5[%c0_8, %c0_9], %22 {strides = array<i32>} : memref<32x128xf32, #tpu.memory_space<vmem>>, vector<32x128xf32>,
    %c0_10 = arith.constant 0 : index
    %c0_11 = arith.constant 0 : index
    %24 = vector.load %arg6[%c0_10, %c0_11] : memref<32x128xf32, #tpu.memory_space<vmem>>, vector<32x128xf32>
    tpu.vector_store %arg6[%c0_10, %c0_11], %20 {strides = array<i32>} : memref<32x128xf32, #tpu.memory_space<vmem>>, vector<32x128xf32>,
    return
  }
  func.func @transform_0(%arg0: i32) -> (i32, i32) {
    %c0_i32 = arith.constant 0 : i32
    %c0_i32_0 = arith.constant 0 : i32
    return %c0_i32, %arg0 : i32, i32
  }
  func.func @transform_1(%arg0: i32) -> (i32, i32) {
    %c0_i32 = arith.constant 0 : i32
    %c0_i32_0 = arith.constant 0 : i32
    %c0_i32_1 = arith.constant 0 : i32
    return %c0_i32, %c0_i32_0 : i32, i32
  }
  func.func @transform_2(%arg0: i32) -> (i32, i32) {
    %c0_i32 = arith.constant 0 : i32
    %c0_i32_0 = arith.constant 0 : i32
    %c0_i32_1 = arith.constant 0 : i32
    return %c0_i32, %c0_i32_0 : i32, i32
  }
  func.func @transform_3(%arg0: i32) -> (i32, i32) {
    %c0_i32 = arith.constant 0 : i32
    %c0_i32_0 = arith.constant 0 : i32
    return %c0_i32, %arg0 : i32, i32
  }
  func.func @transform_4(%arg0: i32) -> (i32, i32) {
    %c0_i32 = arith.constant 0 : i32
    %c0_i32_0 = arith.constant 0 : i32
    return %c0_i32, %arg0 : i32, i32
  }
  func.func @transform_5(%arg0: i32) -> (i32, i32) {
    %c0_i32 = arith.constant 0 : i32
    %c0_i32_0 = arith.constant 0 : i32
    return %c0_i32, %arg0 : i32, i32
  }
}

</mosaic_0001>

<llo_original>
// kernel: tpu_custom_call.1
$region0: #{tpu_custom_call.1}
  #allocation0 [shape = 'u32[]', space=smem, size = 0x4, offset = 0x4, fixed_abs, tag = 'smem constant byte address 0x4 - core index']
  #allocation1 [shape = 'u32[144,128]{1,0:T(1,128)}', space=vmem, size = 0x12000, scoped, tag = 'internal scratch']
  %s0 = inlined_call_operand.hbm [shape: bf16[384,512], index: 0, kind: input, shape index: {}]
  %s1 = inlined_call_operand.hbm [shape: bf16[128,384], index: 1, kind: input, shape index: {}]
  %s2 = inlined_call_operand.vmem [shape: f32[128,1], index: 2, kind: input, shape index: {}]
  %s3 = inlined_call_operand.vmem [shape: f32[32,512], index: 3, kind: input, shape index: {}]
  %s4 = inlined_call_operand.hbm [shape: f32[32,512], index: 4, kind: output, shape index: {0}]
  %s5 = inlined_call_operand.hbm [shape: f32[32,512], index: 5, kind: output, shape index: {1}]
  %6 = xla_tuple %s4, %s5
  %s7 = sld [smem:[#allocation0]]
  $region103: #{tpu_custom_call.1} parent=0
    _
  %s9 = ssub.s32 1, %s7
  %s10 = scalar_select 0, %s9, %s7
  $region1: #{tpu_custom_call.1} parent=0
    #allocation2 [shape = 'u8[196608]{0}', space=vmem, size = 0x30000, scoped, tag = 'input window, operand 0']
    #allocation3 [shape = 's32[2]{0}', space=sflag, size = 0x8, scoped, tag = 'scoped memory for tpu_custom_call.1']
    #allocation4 [shape = 's32[2]{0}', space=sflag, size = 0x8, scoped, tag = 'scoped memory for tpu_custom_call.1']
    #allocation5 [shape = 'u8[98304]{0}', space=vmem, size = 0x18000, scoped, tag = 'input window, operand 1, single buffered']
    #allocation6 [shape = 's32[1]{0}', space=sflag, size = 0x4, scoped, tag = 'scoped memory for tpu_custom_call.1']
    #allocation7 [shape = 'u8[32768]{0}', space=vmem, size = 0x8000, scoped, tag = 'input window, operand 3']
    #allocation8 [shape = 'u8[32768]{0}', space=vmem, size = 0x8000, scoped, tag = 'output window, operand 0']
    #allocation9 [shape = 'u8[32768]{0}', space=vmem, size = 0x8000, scoped, tag = 'output window, operand 1']
    #allocation10 [shape = 's32[2]{0}', space=sflag, size = 0x8, scoped, tag = 'scoped memory for tpu_custom_call.1']
    %11 = vsyncpa [#allocation3], 0
    %s12 = scalar_lea.sflag [#allocation3], 1
    %13 = vsyncpa %s12, 0
    %14 = vsyncpa [#allocation6], 0
    %15 = vsyncpa [#allocation4], 0
    %s16 = scalar_lea.sflag [#allocation4], 1
    %17 = vsyncpa %s16, 0
    %18 = vsyncpa [#allocation10], 0
    %s19 = scalar_lea.sflag [#allocation10], 1
    %20 = vsyncpa %s19, 0
    loop: start=0, step=1, limit=6
    $region2: #{tpu_custom_call.1} parent=1 // loop_pre_header
      _
    $region3: #{tpu_custom_call.1} parent=1 // loop_header
      %s22 = sphi 0, %s26
      %p23 = scmp.ge.s32.totalorder %s22, 6
      %s32 = sphi 0, %s34
      %s35 = sphi 0, %s32
      %s36 = sphi 0, %s35
      %s52 = sphi 0, %s36
      %s56 = sphi 0, %s56
      %s58 = sphi 0, %s56
      %s59 = sphi 0, %s58
      %s73 = sphi 0, %s59
      %s77 = sphi 0, %s77
      %s79 = sphi 0, %s77
      %s80 = sphi 0, %s79
      %s94 = sphi 0, %s80
      %s100 = sphi 0, %s102
      %s103 = sphi 0, %s100
      %s104 = sphi 0, %s103
      %s120 = sphi 0, %s104
      %s126 = sphi 0, %s128
      %s129 = sphi 0, %s126
      %s130 = sphi 0, %s129
      %s146 = sphi 0, %s130
      %s152 = sphi 0, %s154
      %s155 = sphi 0, %s152
      %s156 = sphi 0, %s155
      %s172 = sphi 0, %s156
    $region4: #{tpu_custom_call.1} parent=1 // loop_header_branch
      %25 = sbr.rel (%p23) target = $region8
    $region5: #{tpu_custom_call.1} parent=1 // loop_body
      %s27 = ssub.s32 %s22, 1
      %s28 = ssub.s32 %s22, 2
      %s29 = sadd.s32 %s22, 1
      %s30 = ssub.s32 %s22, %s29
      %p31 = scmp.eq.s32.totalorder %s30, 0
      %s33 = sadd.s32 %s32, 1
      %s34 = scalar_select %p31, %s32, %s33
      %p37 = pneg %p31
      %p38 = scmp.eq.s32.totalorder %s22, 3
      %p39 = por %p37, %p38
      %p40 = scmp.ne.s32.totalorder %s32, %s35
      %p41 = scmp.eq.s32.totalorder %s22, 0
      %p42 = por %p40, %p41
      %p43 = scmp.ne.s32.totalorder %s32, %s35
      %p44 = scmp.eq.s32.totalorder %s27, 3
      %p45 = por %p43, %p44
      %p46 = scmp.ne.s32.totalorder %s35, %s36
      %p47 = scmp.eq.s32.totalorder %s27, 0
      %p48 = por %p46, %p47
      %p49 = scmp.ne.s32.totalorder %s35, %s36
      %p50 = scmp.eq.s32.totalorder %s28, 3
      %p51 = por %p49, %p50
      %p53 = scmp.ne.s32.totalorder %s36, %s52
      %p54 = scmp.eq.s32.totalorder %s28, 0
      %p55 = por %p53, %p54
      %s57 = sadd.s32 %s56, 1
      %p60 = scmp.eq.s32.totalorder %s22, 3
      %p61 = scmp.ne.s32.totalorder %s56, %s58
      %p62 = scmp.eq.s32.totalorder %s22, 0
      %p63 = por %p61, %p62
      %p64 = scmp.ne.s32.totalorder %s56, %s58
      %p65 = scmp.eq.s32.totalorder %s27, 3
      %p66 = por %p64, %p65
      %p67 = scmp.ne.s32.totalorder %s58, %s59
      %p68 = scmp.eq.s32.totalorder %s27, 0
      %p69 = por %p67, %p68
      %p70 = scmp.ne.s32.totalorder %s58, %s59
      %p71 = scmp.eq.s32.totalorder %s28, 3
      %p72 = por %p70, %p71
      %p74 = scmp.ne.s32.totalorder %s59, %s73
      %p75 = scmp.eq.s32.totalorder %s28, 0
      %p76 = por %p74, %p75
      %s78 = sadd.s32 %s77, 1
      %p81 = scmp.eq.s32.totalorder %s22, 3
      %p82 = scmp.ne.s32.totalorder %s77, %s79
      %p83 = scmp.eq.s32.totalorder %s22, 0
      %p84 = por %p82, %p83
      %p85 = scmp.ne.s32.totalorder %s77, %s79
      %p86 = scmp.eq.s32.totalorder %s27, 3
      %p87 = por %p85, %p86
      %p88 = scmp.ne.s32.totalorder %s79, %s80
      %p89 = scmp.eq.s32.totalorder %s27, 0
      %p90 = por %p88, %p89
      %p91 = scmp.ne.s32.totalorder %s79, %s80
      %p92 = scmp.eq.s32.totalorder %s28, 3
      %p93 = por %p91, %p92
      %p95 = scmp.ne.s32.totalorder %s80, %s94
      %p96 = scmp.eq.s32.totalorder %s28, 0
      %p97 = por %p95, %p96
      %s98 = ssub.s32 %s22, %s29
      %p99 = scmp.eq.s32.totalorder %s98, 0
      %s101 = sadd.s32 %s100, 1
      %s102 = scalar_select %p99, %s100, %s101
      %p105 = pneg %p99
      %p106 = scmp.eq.s32.totalorder %s22, 3
      %p107 = por %p105, %p106
      %p108 = scmp.ne.s32.totalorder %s100, %s103
      %p109 = scmp.eq.s32.totalorder %s22, 0
      %p110 = por %p108, %p109
      %p111 = scmp.ne.s32.totalorder %s100, %s103
      %p112 = scmp.eq.s32.totalorder %s27, 3
      %p113 = por %p111, %p112
      %p114 = scmp.ne.s32.totalorder %s103, %s104
      %p115 = scmp.eq.s32.totalorder %s27, 0
      %p116 = por %p114, %p115
      %p117 = scmp.ne.s32.totalorder %s103, %s104
      %p118 = scmp.eq.s32.totalorder %s28, 3
      %p119 = por %p117, %p118
      %p121 = scmp.ne.s32.totalorder %s104, %s120
      %p122 = scmp.eq.s32.totalorder %s28, 0
      %p123 = por %p121, %p122
      %s124 = ssub.s32 %s22, %s29
      %p125 = scmp.eq.s32.totalorder %s124, 0
      %s127 = sadd.s32 %s126, 1
      %s128 = scalar_select %p125, %s126, %s127
      %p131 = pneg %p125
      %p132 = scmp.eq.s32.totalorder %s22, 3
      %p133 = por %p131, %p132
      %p134 = scmp.ne.s32.totalorder %s126, %s129
      %p135 = scmp.eq.s32.totalorder %s22, 0
      %p136 = por %p134, %p135
      %p137 = scmp.ne.s32.totalorder %s126, %s129
      %p138 = scmp.eq.s32.totalorder %s27, 3
      %p139 = por %p137, %p138
      %p140 = scmp.ne.s32.totalorder %s129, %s130
      %p141 = scmp.eq.s32.totalorder %s27, 0
      %p142 = por %p140, %p141
      %p143 = scmp.ne.s32.totalorder %s129, %s130
      %p144 = scmp.eq.s32.totalorder %s28, 3
      %p145 = por %p143, %p144
      %p147 = scmp.ne.s32.totalorder %s130, %s146
      %p148 = scmp.eq.s32.totalorder %s28, 0
      %p149 = por %p147, %p148
      %s150 = ssub.s32 %s22, %s29
      %p151 = scmp.eq.s32.totalorder %s150, 0
      %s153 = sadd.s32 %s152, 1
      %s154 = scalar_select %p151, %s152, %s153
      %p157 = pneg %p151
      %p158 = scmp.eq.s32.totalorder %s22, 3
      %p159 = por %p157, %p158
      %p160 = scmp.ne.s32.totalorder %s152, %s155
      %p161 = scmp.eq.s32.totalorder %s22, 0
      %p162 = por %p160, %p161
      %p163 = scmp.ne.s32.totalorder %s152, %s155
      %p164 = scmp.eq.s32.totalorder %s27, 3
      %p165 = por %p163, %p164
      %p166 = scmp.ne.s32.totalorder %s155, %s156
      %p167 = scmp.eq.s32.totalorder %s27, 0
      %p168 = por %p166, %p167
      %p169 = scmp.ne.s32.totalorder %s155, %s156
      %p170 = scmp.eq.s32.totalorder %s28, 3
      %p171 = por %p169, %p170
      %p173 = scmp.ne.s32.totalorder %s156, %s172
      %p174 = scmp.eq.s32.totalorder %s28, 0
      %p175 = por %p173, %p174
      %p176 = scmp.le.s32.totalorder 1, %s22
      %p177 = scmp.lt.s32.totalorder %s22, 5
      %p178 = pnand %p176, %p177
      %p179 = pneg %p178
      // Predicated region
      $region9: #{tpu_custom_call.1} parent=5 // pred_check
        _
      $region10: #{tpu_custom_call.1} parent=5 // pred_check_branch
        %181 = sbr.rel (%p178) target = $region12
      $region11: #{tpu_custom_call.1} parent=5 // pred_region
        %s182 = ssub.s32 %s22, 1
        // Predicated region
        $region13: #{tpu_custom_call.1} parent=11 // pred_check
          %p183 = pneg %p69
        $region14: #{tpu_custom_call.1} parent=11 // pred_check_branch
          %185 = sbr.rel (%p183) target = $region16
        $region15: #{tpu_custom_call.1} parent=11 // pred_region
          %s187 = ssub.s32 3072, 3072
          %188 = vsyncadd [#allocation6], %s187
          %s189 = sshll.u32 [#allocation5], 4
          %s190 = int_to_ptr.vmem [resolvable:$true] %s189
          %195 = dma.hbm_to_vmem [thread:$0]  %s1, 3072, %s190, [#allocation6], 192, 192, 12
        $region16: #{tpu_custom_call.1} parent=11 // pred_fallthru
          _
        // Predicated region
        $region17: #{tpu_custom_call.1} parent=11 // pred_check
          %p196 = pneg %p90
        $region18: #{tpu_custom_call.1} parent=11 // pred_check_branch
          %198 = sbr.rel (%p196) target = $region20
        $region19: #{tpu_custom_call.1} parent=11 // pred_region
          _
        $region20: #{tpu_custom_call.1} parent=11 // pred_fallthru
          _
      $region12: #{tpu_custom_call.1} parent=5 // pred_fallthru
        _
      %p199 = scmp.lt.s32.totalorder %s22, 4
      // Predicated region
      $region21: #{tpu_custom_call.1} parent=5 // pred_check
        %p200 = pneg %p199
      $region22: #{tpu_custom_call.1} parent=5 // pred_check_branch
        %202 = sbr.rel (%p200) target = $region24
      $region23: #{tpu_custom_call.1} parent=5 // pred_region
        // Predicated region
        $region25: #{tpu_custom_call.1} parent=23 // pred_check
          %p203 = pneg %p42
        $region26: #{tpu_custom_call.1} parent=23 // pred_check_branch
          %205 = sbr.rel (%p203) target = $region28
        $region27: #{tpu_custom_call.1} parent=23 // pred_region
          %s206 = sand.u32 %s32, 1
          %s207 = scalar_lea.sflag [#allocation3], %s206
          %s208 = sand.u32 %s32, 1
          %s209 = smul.addr %s208, 192
          %s210 = scalar_lea.vmem [#allocation2], %s209
          %s212 = ssub.s32 3072, 3072
          %213 = vsyncadd %s207, %s212
          %s214 = smul.addr %s22, 64
          %s215 = scalar_lea.hbm %s0, %s214
          %s216 = sshll.u32 %s210, 4
          %s217 = int_to_ptr.vmem [resolvable:$true] %s216
          %222 = dma.hbm_to_vmem [thread:$0]  %s215, 3072, %s217, %s207, 256, 64, 4
        $region28: #{tpu_custom_call.1} parent=23 // pred_fallthru
          _
        // Predicated region
        $region29: #{tpu_custom_call.1} parent=23 // pred_check
          %p223 = pneg %p110
        $region30: #{tpu_custom_call.1} parent=23 // pred_check_branch
          %225 = sbr.rel (%p223) target = $region32
        $region31: #{tpu_custom_call.1} parent=23 // pred_region
          %s226 = sand.u32 %s100, 1
          %s227 = sand.u32 %s100, 1
          %s228 = smul.addr %s227, 32
          %s229 = scalar_lea.vmem [#allocation7], %s228
          %s230 = smul.addr %s22, 8
          %s231 = scalar_lea.vmem %s3, %s230
          // Predicated region
          $region33: #{tpu_custom_call.1} parent=31 // pred_check
            _
          $region34: #{tpu_custom_call.1} parent=31 // pred_check_branch
            %233 = sbr.rel (0) target = $region36
          $region35: #{tpu_custom_call.1} parent=31 // pred_region
            // Predicated region
            $region37: #{tpu_custom_call.1} parent=35 // pred_check
              _
            $region38: #{tpu_custom_call.1} parent=35 // pred_check_branch
              %235 = sbr.rel (0) target = $region40
            $region39: #{tpu_custom_call.1} parent=35 // pred_region
              // Predicated region
              $region52: #{tpu_custom_call.1} parent=39 // pred_check
                _
              $region53: #{tpu_custom_call.1} parent=39 // pred_check_branch
                %256 = sbr.rel (0) target = $region55
              $region54: #{tpu_custom_call.1} parent=39 // pred_region
                loop: start=0, step=1, limit=1
                $region56: #{tpu_custom_call.1} parent=54 // loop_pre_header
                  _
                $region57: #{tpu_custom_call.1} parent=54 // loop_header
                  %s258 = sphi 0, %s262
                  %p259 = scmp.ge.s32.totalorder %s258, 1
                  %s263 = sphi %s231, %s231
                  %s264 = sphi %s229, %s229
                $region58: #{tpu_custom_call.1} parent=54 // loop_header_branch
                  %261 = sbr.rel (%p259) target = $region62
                $region59: #{tpu_custom_call.1} parent=54 // loop_body
                  %v265 = vld [vmem:[%s263] sm:$0xff]
                  %266 = vst [vmem:[%s264] sm:$0xff] %v265
                  %v267 = vld [vmem:[%s263 + $0x20] sm:$0xff]
                  %268 = vst [vmem:[%s264 + $0x8] sm:$0xff] %v267
                  %v269 = vld [vmem:[%s263 + $0x40] sm:$0xff]
                  %270 = vst [vmem:[%s264 + $0x10] sm:$0xff] %v269
                  %v271 = vld [vmem:[%s263 + $0x60] sm:$0xff]
                  %272 = vst [vmem:[%s264 + $0x18] sm:$0xff] %v271
                $region60: #{tpu_custom_call.1} parent=54 // loop_footer
                  %s262 = sadd.s32 1, %s258
                $region61: #{tpu_custom_call.1} parent=54 // loop_footer_branch
                  %257 = sbr.rel target = $region57
                $region62: #{tpu_custom_call.1} parent=54 // loop_exit
                  _
              $region55: #{tpu_custom_call.1} parent=39 // pred_fallthru
                _
              // Predicated region
              $region63: #{tpu_custom_call.1} parent=39 // pred_check
                _
              $region64: #{tpu_custom_call.1} parent=39 // pred_check_branch
                %274 = sbr.rel target = $region66
              $region65: #{tpu_custom_call.1} parent=39 // pred_region
                _
              $region66: #{tpu_custom_call.1} parent=39 // pred_fallthru
                _
            $region40: #{tpu_custom_call.1} parent=35 // pred_fallthru
              _
            // Predicated region
            $region41: #{tpu_custom_call.1} parent=35 // pred_check
              _
            $region42: #{tpu_custom_call.1} parent=35 // pred_check_branch
              %237 = sbr.rel target = $region44
            $region43: #{tpu_custom_call.1} parent=35 // pred_region
              loop: start=0, step=1, limit=1
              $region45: #{tpu_custom_call.1} parent=43 // loop_pre_header
                _
              $region46: #{tpu_custom_call.1} parent=43 // loop_header
                %s240 = sphi 0, %s244
                %p241 = scmp.ge.s32.totalorder %s240, 1
                %s245 = sphi %s231, %s231
                %s246 = sphi %s229, %s229
              $region47: #{tpu_custom_call.1} parent=43 // loop_header_branch
                %243 = sbr.rel (%p241) target = $region51
              $region48: #{tpu_custom_call.1} parent=43 // loop_body
                %v247 = vld [vmem:[%s245] sm:$0xff]
                %248 = vst [vmem:[%s246] sm:$0xff] %v247
                %v249 = vld [vmem:[%s245 + $0x20] sm:$0xff]
                %250 = vst [vmem:[%s246 + $0x8] sm:$0xff] %v249
                %v251 = vld [vmem:[%s245 + $0x40] sm:$0xff]
                %252 = vst [vmem:[%s246 + $0x10] sm:$0xff] %v251
                %v253 = vld [vmem:[%s245 + $0x60] sm:$0xff]
                %254 = vst [vmem:[%s246 + $0x18] sm:$0xff] %v253
              $region49: #{tpu_custom_call.1} parent=43 // loop_footer
                %s244 = sadd.s32 1, %s240
              $region50: #{tpu_custom_call.1} parent=43 // loop_footer_branch
                %239 = sbr.rel target = $region46
              $region51: #{tpu_custom_call.1} parent=43 // loop_exit
                _
            $region44: #{tpu_custom_call.1} parent=35 // pred_fallthru
              _
          $region36: #{tpu_custom_call.1} parent=31 // pred_fallthru
            _
          %275 = vnop
        $region32: #{tpu_custom_call.1} parent=23 // pred_fallthru
          _
      $region24: #{tpu_custom_call.1} parent=5 // pred_fallthru
        _
      %p276 = scmp.le.s32.totalorder 1, %s22
      %p277 = scmp.lt.s32.totalorder %s22, 5
      %p278 = pnand %p276, %p277
      %p279 = pneg %p278
      // Predicated region
      $region67: #{tpu_custom_call.1} parent=5 // pred_check
        _
      $region68: #{tpu_custom_call.1} parent=5 // pred_check_branch
        %281 = sbr.rel (%p278) target = $region70
      $region69: #{tpu_custom_call.1} parent=5 // pred_region
        %s282 = ssub.s32 %s22, 1
        %s283 = sand.u32 %s35, 1
        %s284 = scalar_lea.sflag [#allocation3], %s283
        %s285 = sand.u32 %s35, 1
        %s286 = smul.addr %s285, 192
        %s287 = scalar_lea.vmem [#allocation2], %s286
        // Predicated region
        $region71: #{tpu_custom_call.1} parent=69 // pred_check
          %p288 = pneg %p48
        $region72: #{tpu_custom_call.1} parent=69 // pred_check_branch
          %290 = sbr.rel (%p288) target = $region74
        $region73: #{tpu_custom_call.1} parent=69 // pred_region
          %291 = dma.done %s284, 3072
        $region74: #{tpu_custom_call.1} parent=69 // pred_fallthru
          _
        // Predicated region
        $region75: #{tpu_custom_call.1} parent=69 // pred_check
          %p292 = pneg %p69
        $region76: #{tpu_custom_call.1} parent=69 // pred_check_branch
          %294 = sbr.rel (%p292) target = $region78
        $region77: #{tpu_custom_call.1} parent=69 // pred_region
          %295 = dma.done [#allocation6], 3072
        $region78: #{tpu_custom_call.1} parent=69 // pred_fallthru
          _
        %s296 = sand.u32 %s103, 1
        %s297 = sand.u32 %s103, 1
        %s298 = smul.addr %s297, 32
        %s299 = scalar_lea.vmem [#allocation7], %s298
        // Predicated region
        $region79: #{tpu_custom_call.1} parent=69 // pred_check
          %p300 = pneg %p116
        $region80: #{tpu_custom_call.1} parent=69 // pred_check_branch
          %302 = sbr.rel (%p300) target = $region82
        $region81: #{tpu_custom_call.1} parent=69 // pred_region
          _
        $region82: #{tpu_custom_call.1} parent=69 // pred_fallthru
          _
        %s303 = sand.u32 %s35, 1
        %s304 = scalar_lea.sflag [#allocation3], %s303
        %s305 = sand.u32 %s35, 1
        %s306 = smul.addr %s305, 192
        %s307 = scalar_lea.vmem [#allocation2], %s306
        %p308 = pneg %p48
        %p309 = pneg %p45
        %p310 = pneg %p69
        %p311 = pneg %p66
        %p312 = pneg %p90
        %p313 = pneg %p87
        %s314 = sand.u32 %s103, 1
        %s315 = sand.u32 %s103, 1
        %s316 = smul.addr %s315, 32
        %s317 = scalar_lea.vmem [#allocation7], %s316
        %p318 = pneg %p116
        %p319 = pneg %p113
        %p320 = pneg %p142
        %p321 = pneg %p139
        %s322 = sand.u32 %s129, 1
        %s323 = scalar_lea.sflag [#allocation4], %s322
        %s324 = sand.u32 %s129, 1
        %s325 = smul.addr %s324, 32
        %s326 = scalar_lea.vmem [#allocation8], %s325
        %p327 = pneg %p168
        %p328 = pneg %p165
        %s329 = sand.u32 %s155, 1
        %s330 = scalar_lea.sflag [#allocation10], %s329
        %s331 = sand.u32 %s155, 1
        %s332 = smul.addr %s331, 32
        %s333 = scalar_lea.vmem [#allocation9], %s332
        %v335 = vld [vmem:[#allocation5] sm:$0xff]
        %v336 = vld [vmem:[#allocation5 + $0x8] sm:$0xf]
        %v337 = vld [vmem:[#allocation5 + $0xc] sm:$0xff]
        %v338 = vld [vmem:[#allocation5 + $0x14] sm:$0xf]
        %v339 = vld [vmem:[#allocation5 + $0x18] sm:$0xff]
        %v340 = vld [vmem:[#allocation5 + $0x20] sm:$0xf]
        %v341 = vld [vmem:[#allocation5 + $0x24] sm:$0xff]
        %v342 = vld [vmem:[#allocation5 + $0x2c] sm:$0xf]
        %v343 = vld [vmem:[#allocation5 + $0x30] sm:$0xff]
        %v344 = vld [vmem:[#allocation5 + $0x38] sm:$0xf]
        %v345 = vld [vmem:[#allocation5 + $0x3c] sm:$0xff]
        %v346 = vld [vmem:[#allocation5 + $0x44] sm:$0xf]
        %v347 = vld [vmem:[#allocation5 + $0x48] sm:$0xff]
        %v348 = vld [vmem:[#allocation5 + $0x50] sm:$0xf]
        %v349 = vld [vmem:[#allocation5 + $0x54] sm:$0xff]
        %v350 = vld [vmem:[#allocation5 + $0x5c] sm:$0xf]
        %v351 = vld [vmem:[#allocation5 + $0x60] sm:$0xff]
        %v352 = vld [vmem:[#allocation5 + $0x68] sm:$0xf]
        %v353 = vld [vmem:[#allocation5 + $0x6c] sm:$0xff]
        %v354 = vld [vmem:[#allocation5 + $0x74] sm:$0xf]
        %v355 = vld [vmem:[#allocation5 + $0x78] sm:$0xff]
        %v356 = vld [vmem:[#allocation5 + $0x80] sm:$0xf]
        %v357 = vld [vmem:[#allocation5 + $0x84] sm:$0xff]
        %v358 = vld [vmem:[#allocation5 + $0x8c] sm:$0xf]
        %v359 = vld [vmem:[#allocation5 + $0x90] sm:$0xff]
        %v360 = vld [vmem:[#allocation5 + $0x98] sm:$0xf]
        %v361 = vld [vmem:[#allocation5 + $0x9c] sm:$0xff]
        %v362 = vld [vmem:[#allocation5 + $0xa4] sm:$0xf]
        %v363 = vld [vmem:[#allocation5 + $0xa8] sm:$0xff]
        %v364 = vld [vmem:[#allocation5 + $0xb0] sm:$0xf]
        %v365 = vld [vmem:[#allocation5 + $0xb4] sm:$0xff]
        %v366 = vld [vmem:[#allocation5 + $0xbc] sm:$0xf]
        %v367 = vld [vmem:[%s287] sm:$0xf]
        %v368 = vld [vmem:[%s287 + $0x4] sm:$0xf]
        %v369 = vld [vmem:[%s287 + $0x8] sm:$0xf]
        %v370 = vld [vmem:[%s287 + $0xc] sm:$0xf]
        %v371 = vld [vmem:[%s287 + $0x10] sm:$0xf]
        %v372 = vld [vmem:[%s287 + $0x14] sm:$0xf]
        %v373 = vld [vmem:[%s287 + $0x18] sm:$0xf]
        %v374 = vld [vmem:[%s287 + $0x1c] sm:$0xf]
        %v375 = vld [vmem:[%s287 + $0x20] sm:$0xf]
        %v376 = vld [vmem:[%s287 + $0x24] sm:$0xf]
        %v377 = vld [vmem:[%s287 + $0x28] sm:$0xf]
        %v378 = vld [vmem:[%s287 + $0x2c] sm:$0xf]
        %v379 = vld [vmem:[%s287 + $0x30] sm:$0xf]
        %v380 = vld [vmem:[%s287 + $0x34] sm:$0xf]
        %v381 = vld [vmem:[%s287 + $0x38] sm:$0xf]
        %v382 = vld [vmem:[%s287 + $0x3c] sm:$0xf]
        %v383 = vld [vmem:[%s287 + $0x40] sm:$0xf]
        %v384 = vld [vmem:[%s287 + $0x44] sm:$0xf]
        %v385 = vld [vmem:[%s287 + $0x48] sm:$0xf]
        %v386 = vld [vmem:[%s287 + $0x4c] sm:$0xf]
        %v387 = vld [vmem:[%s287 + $0x50] sm:$0xf]
        %v388 = vld [vmem:[%s287 + $0x54] sm:$0xf]
        %v389 = vld [vmem:[%s287 + $0x58] sm:$0xf]
        %v390 = vld [vmem:[%s287 + $0x5c] sm:$0xf]
        %v391 = vld [vmem:[%s287 + $0x60] sm:$0xf]
        %v392 = vld [vmem:[%s287 + $0x64] sm:$0xf]
        %v393 = vld [vmem:[%s287 + $0x68] sm:$0xf]
        %v394 = vld [vmem:[%s287 + $0x6c] sm:$0xf]
        %v395 = vld [vmem:[%s287 + $0x70] sm:$0xf]
        %v396 = vld [vmem:[%s287 + $0x74] sm:$0xf]
        %v397 = vld [vmem:[%s287 + $0x78] sm:$0xf]
        %v398 = vld [vmem:[%s287 + $0x7c] sm:$0xf]
        %v399 = vld [vmem:[%s287 + $0x80] sm:$0xf]
        %v400 = vld [vmem:[%s287 + $0x84] sm:$0xf]
        %v401 = vld [vmem:[%s287 + $0x88] sm:$0xf]
        %v402 = vld [vmem:[%s287 + $0x8c] sm:$0xf]
        %v403 = vld [vmem:[%s287 + $0x90] sm:$0xf]
        %v404 = vld [vmem:[%s287 + $0x94] sm:$0xf]
        %v405 = vld [vmem:[%s287 + $0x98] sm:$0xf]
        %v406 = vld [vmem:[%s287 + $0x9c] sm:$0xf]
        %v407 = vld [vmem:[%s287 + $0xa0] sm:$0xf]
        %v408 = vld [vmem:[%s287 + $0xa4] sm:$0xf]
        %v409 = vld [vmem:[%s287 + $0xa8] sm:$0xf]
        %v410 = vld [vmem:[%s287 + $0xac] sm:$0xf]
        %v411 = vld [vmem:[%s287 + $0xb0] sm:$0xf]
        %v412 = vld [vmem:[%s287 + $0xb4] sm:$0xf]
        %v413 = vld [vmem:[%s287 + $0xb8] sm:$0xf]
        %v414 = vld [vmem:[%s287 + $0xbc] sm:$0xf]
        %v415 = vld [vmem:[%s2] sm:$0xff]
        %v416 = vld [vmem:[%s2 + $0x8] sm:$0xff]
        %v417 = vld [vmem:[%s2 + $0x10] sm:$0xff]
        %v418 = vld [vmem:[%s2 + $0x18] sm:$0xff]
        %v419 = vld [vmem:[%s2 + $0x20] sm:$0xff]
        %v420 = vld [vmem:[%s2 + $0x28] sm:$0xff]
        %v421 = vld [vmem:[%s2 + $0x30] sm:$0xff]
        %v422 = vld [vmem:[%s2 + $0x38] sm:$0xff]
        %v423 = vld [vmem:[%s2 + $0x40] sm:$0xff]
        %v424 = vld [vmem:[%s2 + $0x48] sm:$0xff]
        %v425 = vld [vmem:[%s2 + $0x50] sm:$0xff]
        %v426 = vld [vmem:[%s2 + $0x58] sm:$0xff]
        %v427 = vld [vmem:[%s2 + $0x60] sm:$0xff]
        %v428 = vld [vmem:[%s2 + $0x68] sm:$0xff]
        %v429 = vld [vmem:[%s2 + $0x70] sm:$0xff]
        %v430 = vld [vmem:[%s2 + $0x78] sm:$0xff]
        %432 = vset.pattern.permute.xlu0 0
        %433 = vperm.xlu0 %432, %v415
        %v434 = vpop.permute.xlu0 %433
        %437 = vset.pattern.permute.xlu0 0
        %438 = vperm.xlu0 %437, %v416
        %v439 = vpop.permute.xlu0 %438
        %442 = vset.pattern.permute.xlu0 0
        %443 = vperm.xlu0 %442, %v417
        %v444 = vpop.permute.xlu0 %443
        %447 = vset.pattern.permute.xlu0 0
        %448 = vperm.xlu0 %447, %v418
        %v449 = vpop.permute.xlu0 %448
        %452 = vset.pattern.permute.xlu0 0
        %453 = vperm.xlu0 %452, %v419
        %v454 = vpop.permute.xlu0 %453
        %457 = vset.pattern.permute.xlu0 0
        %458 = vperm.xlu0 %457, %v420
        %v459 = vpop.permute.xlu0 %458
        %462 = vset.pattern.permute.xlu0 0
        %463 = vperm.xlu0 %462, %v421
        %v464 = vpop.permute.xlu0 %463
        %467 = vset.pattern.permute.xlu0 0
        %468 = vperm.xlu0 %467, %v422
        %v469 = vpop.permute.xlu0 %468
        %472 = vset.pattern.permute.xlu0 0
        %473 = vperm.xlu0 %472, %v423
        %v474 = vpop.permute.xlu0 %473
        %477 = vset.pattern.permute.xlu0 0
        %478 = vperm.xlu0 %477, %v424
        %v479 = vpop.permute.xlu0 %478
        %482 = vset.pattern.permute.xlu0 0
        %483 = vperm.xlu0 %482, %v425
        %v484 = vpop.permute.xlu0 %483
        %487 = vset.pattern.permute.xlu0 0
        %488 = vperm.xlu0 %487, %v426
        %v489 = vpop.permute.xlu0 %488
        %492 = vset.pattern.permute.xlu0 0
        %493 = vperm.xlu0 %492, %v427
        %v494 = vpop.permute.xlu0 %493
        %497 = vset.pattern.permute.xlu0 0
        %498 = vperm.xlu0 %497, %v428
        %v499 = vpop.permute.xlu0 %498
        %502 = vset.pattern.permute.xlu0 0
        %503 = vperm.xlu0 %502, %v429
        %v504 = vpop.permute.xlu0 %503
        %507 = vset.pattern.permute.xlu0 0
        %508 = vperm.xlu0 %507, %v430
        %v509 = vpop.permute.xlu0 %508
        %v543 = vunpack.c.l.b16 %v335
        %v544 = vunpack.c.h.b16 %v335
        %v545 = vunpack.c.l.b16 %v336
        %v546 = vunpack.c.l.b16 %v337
        %v547 = vunpack.c.h.b16 %v337
        %v548 = vunpack.c.l.b16 %v338
        %v549 = vunpack.c.l.b16 %v339
        %v550 = vunpack.c.h.b16 %v339
        %v551 = vunpack.c.l.b16 %v340
        %v552 = vunpack.c.l.b16 %v341
        %v553 = vunpack.c.h.b16 %v341
        %v554 = vunpack.c.l.b16 %v342
        %v555 = vunpack.c.l.b16 %v343
        %v556 = vunpack.c.h.b16 %v343
        %v557 = vunpack.c.l.b16 %v344
        %v558 = vunpack.c.l.b16 %v345
        %v559 = vunpack.c.h.b16 %v345
        %v560 = vunpack.c.l.b16 %v346
        %v561 = vunpack.c.l.b16 %v347
        %v562 = vunpack.c.h.b16 %v347
        %v563 = vunpack.c.l.b16 %v348
        %v564 = vunpack.c.l.b16 %v349
        %v565 = vunpack.c.h.b16 %v349
        %v566 = vunpack.c.l.b16 %v350
        %v567 = vunpack.c.l.b16 %v351
        %v568 = vunpack.c.h.b16 %v351
        %v569 = vunpack.c.l.b16 %v352
        %v570 = vunpack.c.l.b16 %v353
        %v571 = vunpack.c.h.b16 %v353
        %v572 = vunpack.c.l.b16 %v354
        %v573 = vunpack.c.l.b16 %v355
        %v574 = vunpack.c.h.b16 %v355
        %v575 = vunpack.c.l.b16 %v356
        %v576 = vunpack.c.l.b16 %v357
        %v577 = vunpack.c.h.b16 %v357
        %v578 = vunpack.c.l.b16 %v358
        %v579 = vunpack.c.l.b16 %v359
        %v580 = vunpack.c.h.b16 %v359
        %v581 = vunpack.c.l.b16 %v360
        %v582 = vunpack.c.l.b16 %v361
        %v583 = vunpack.c.h.b16 %v361
        %v584 = vunpack.c.l.b16 %v362
        %v585 = vunpack.c.l.b16 %v363
        %v586 = vunpack.c.h.b16 %v363
        %v587 = vunpack.c.l.b16 %v364
        %v588 = vunpack.c.l.b16 %v365
        %v589 = vunpack.c.h.b16 %v365
        %v590 = vunpack.c.l.b16 %v366
        %v591 = vpack.c.b16 %v546, %v543
        %v592 = vpack.c.b16 %v547, %v544
        %v593 = vpack.c.b16 %v548, %v545
        %v594 = vpack.c.b16 %v552, %v549
        %v595 = vpack.c.b16 %v553, %v550
        %v596 = vpack.c.b16 %v554, %v551
        %v597 = vpack.c.b16 %v558, %v555
        %v598 = vpack.c.b16 %v559, %v556
        %v599 = vpack.c.b16 %v560, %v557
        %v600 = vpack.c.b16 %v564, %v561
        %v601 = vpack.c.b16 %v565, %v562
        %v602 = vpack.c.b16 %v566, %v563
        %v603 = vpack.c.b16 %v570, %v567
        %v604 = vpack.c.b16 %v571, %v568
        %v605 = vpack.c.b16 %v572, %v569
        %v606 = vpack.c.b16 %v576, %v573
        %v607 = vpack.c.b16 %v577, %v574
        %v608 = vpack.c.b16 %v578, %v575
        %v609 = vpack.c.b16 %v582, %v579
        %v610 = vpack.c.b16 %v583, %v580
        %v611 = vpack.c.b16 %v584, %v581
        %v612 = vpack.c.b16 %v588, %v585
        %v613 = vpack.c.b16 %v589, %v586
        %v614 = vpack.c.b16 %v590, %v587
        %v687 = vunpack.c.l.b16 %v367
        %v688 = vunpack.c.l.b16 %v368
        %v689 = vunpack.c.l.b16 %v369
        %v690 = vunpack.c.l.b16 %v370
        %v691 = vunpack.c.l.b16 %v371
        %v692 = vunpack.c.l.b16 %v372
        %v693 = vunpack.c.l.b16 %v373
        %v694 = vunpack.c.l.b16 %v374
        %v695 = vunpack.c.l.b16 %v375
        %v696 = vunpack.c.l.b16 %v376
        %v697 = vunpack.c.l.b16 %v377
        %v698 = vunpack.c.l.b16 %v378
        %v699 = vunpack.c.l.b16 %v379
        %v700 = vunpack.c.l.b16 %v380
        %v701 = vunpack.c.l.b16 %v381
        %v702 = vunpack.c.l.b16 %v382
        %v703 = vunpack.c.l.b16 %v383
        %v704 = vunpack.c.l.b16 %v384
        %v705 = vunpack.c.l.b16 %v385
        %v706 = vunpack.c.l.b16 %v386
        %v707 = vunpack.c.l.b16 %v387
        %v708 = vunpack.c.l.b16 %v388
        %v709 = vunpack.c.l.b16 %v389
        %v710 = vunpack.c.l.b16 %v390
        %v711 = vunpack.c.l.b16 %v391
        %v712 = vunpack.c.l.b16 %v392
        %v713 = vunpack.c.l.b16 %v393
        %v714 = vunpack.c.l.b16 %v394
        %v715 = vunpack.c.l.b16 %v395
        %v716 = vunpack.c.l.b16 %v396
        %v717 = vunpack.c.l.b16 %v397
        %v718 = vunpack.c.l.b16 %v398
        %v719 = vunpack.c.l.b16 %v399
        %v720 = vunpack.c.l.b16 %v400
        %v721 = vunpack.c.l.b16 %v401
        %v722 = vunpack.c.l.b16 %v402
        %v723 = vunpack.c.l.b16 %v403
        %v724 = vunpack.c.l.b16 %v404
        %v725 = vunpack.c.l.b16 %v405
        %v726 = vunpack.c.l.b16 %v406
        %v727 = vunpack.c.l.b16 %v407
        %v728 = vunpack.c.l.b16 %v408
        %v729 = vunpack.c.l.b16 %v409
        %v730 = vunpack.c.l.b16 %v410
        %v731 = vunpack.c.l.b16 %v411
        %v732 = vunpack.c.l.b16 %v412
        %v733 = vunpack.c.l.b16 %v413
        %v734 = vunpack.c.l.b16 %v414
        %v735 = vpack.c.b16 %v688, %v687
        %v736 = vpack.c.b16 %v690, %v689
        %v737 = vpack.c.b16 %v692, %v691
        %v738 = vpack.c.b16 %v694, %v693
        %v739 = vpack.c.b16 %v696, %v695
        %v740 = vpack.c.b16 %v698, %v697
        %v741 = vpack.c.b16 %v700, %v699
        %v742 = vpack.c.b16 %v702, %v701
        %v743 = vpack.c.b16 %v704, %v703
        %v744 = vpack.c.b16 %v706, %v705
        %v745 = vpack.c.b16 %v708, %v707
        %v746 = vpack.c.b16 %v710, %v709
        %v747 = vpack.c.b16 %v712, %v711
        %v748 = vpack.c.b16 %v714, %v713
        %v749 = vpack.c.b16 %v716, %v715
        %v750 = vpack.c.b16 %v718, %v717
        %v751 = vpack.c.b16 %v720, %v719
        %v752 = vpack.c.b16 %v722, %v721
        %v753 = vpack.c.b16 %v724, %v723
        %v754 = vpack.c.b16 %v726, %v725
        %v755 = vpack.c.b16 %v728, %v727
        %v756 = vpack.c.b16 %v730, %v729
        %v757 = vpack.c.b16 %v732, %v731
        %v758 = vpack.c.b16 %v734, %v733
        %783 = vmatprep.subr.bf16.mxu0 0
        %784 = vmatpush1.bf16.msra.mxu0 %v735
        %785 = vmatprep.subr.bf16.mxu0 0
        %786 = vmatpush1.bf16.msra.mxu0 %v736
        %787 = vmatprep.subr.bf16.mxu0 0
        %788 = vmatpush1.bf16.msra.mxu0 %v737
        %789 = vmatprep.subr.bf16.mxu0 0
        %790 = vmatpush1.bf16.msra.mxu0 %v738
        %791 = vmatprep.subr.bf16.mxu0 0
        %792 = vmatpush1.bf16.msra.mxu0 %v739
        %793 = vmatprep.subr.bf16.mxu0 0
        %794 = vmatpush1.bf16.msra.mxu0 %v740
        %795 = vmatprep.subr.bf16.mxu0 0
        %796 = vmatpush1.bf16.msra.mxu0 %v741
        %797 = vmatprep.subr.bf16.mxu0 0
        %798 = vmatpush1.bf16.msra.mxu0 %v742
        %799 = vmatprep.subr.bf16.mxu0 0
        %800 = vmatpush1.bf16.msra.mxu0 %v743
        %801 = vmatprep.subr.bf16.mxu0 0
        %802 = vmatpush1.bf16.msra.mxu0 %v744
        %803 = vmatprep.subr.bf16.mxu0 0
        %804 = vmatpush1.bf16.msra.mxu0 %v745
        %805 = vmatprep.subr.bf16.mxu0 0
        %806 = vmatpush1.bf16.msra.mxu0 %v746
        %807 = vmatprep.subr.bf16.mxu0 0
        %808 = vmatpush1.bf16.msra.mxu0 %v747
        %809 = vmatprep.subr.bf16.mxu0 0
        %810 = vmatpush1.bf16.msra.mxu0 %v748
        %811 = vmatprep.subr.bf16.mxu0 0
        %812 = vmatpush1.bf16.msra.mxu0 %v749
        %813 = vmatprep.subr.bf16.mxu0 0
        %814 = vmatpush1.bf16.msra.mxu0 %v750
        %815 = vmatprep.mubr.bf16.mxu0 %v592
        %816 = vmatmul.mubr.bf16.gmra.mrb[0].mxu0 %v591
        %v817 = vpop.f32.mrb[0].mxu0
        %v818 = vadd.f32 %v434, %v817
        %v819 = vpop.f32.mrb[0].mxu0
        %v820 = vpop.f32.mrb[0].mxu0
        %v821 = vadd.f32 %v439, %v820
        %v822 = vpop.f32.mrb[0].mxu0
        %823 = vmatprep.mubr.bf16.mxu0 %v595
        %824 = vmatmul.mubr.bf16.gmra.mrb[0].mxu0 %v594
        %v825 = vpop.f32.mrb[0].mxu0
        %v826 = vadd.f32 %v444, %v825
        %v827 = vpop.f32.mrb[0].mxu0
        %v828 = vpop.f32.mrb[0].mxu0
        %v829 = vadd.f32 %v449, %v828
        %v830 = vpop.f32.mrb[0].mxu0
        %831 = vmatprep.mubr.bf16.mxu0 %v598
        %832 = vmatmul.mubr.bf16.gmra.mrb[0].mxu0 %v597
        %v833 = vpop.f32.mrb[0].mxu0
        %v834 = vadd.f32 %v454, %v833
        %v835 = vpop.f32.mrb[0].mxu0
        %v836 = vpop.f32.mrb[0].mxu0
        %v837 = vadd.f32 %v459, %v836
        %v838 = vpop.f32.mrb[0].mxu0
        %839 = vmatprep.mubr.bf16.mxu0 %v601
        %840 = vmatmul.mubr.bf16.gmra.mrb[0].mxu0 %v600
        %v841 = vpop.f32.mrb[0].mxu0
        %v842 = vadd.f32 %v464, %v841
        %v843 = vpop.f32.mrb[0].mxu0
        %v844 = vpop.f32.mrb[0].mxu0
        %v845 = vadd.f32 %v469, %v844
        %v846 = vpop.f32.mrb[0].mxu0
        %847 = vmatprep.mubr.bf16.mxu0 %v604
        %848 = vmatmul.mubr.bf16.gmra.mrb[0].mxu0 %v603
        %v849 = vpop.f32.mrb[0].mxu0
        %v850 = vadd.f32 %v474, %v849
        %v851 = vpop.f32.mrb[0].mxu0
        %v852 = vpop.f32.mrb[0].mxu0
        %v853 = vadd.f32 %v479, %v852
        %v854 = vpop.f32.mrb[0].mxu0
        %855 = vmatprep.mubr.bf16.mxu0 %v607
        %856 = vmatmul.mubr.bf16.gmra.mrb[0].mxu0 %v606
        %v857 = vpop.f32.mrb[0].mxu0
        %v858 = vadd.f32 %v484, %v857
        %v859 = vpop.f32.mrb[0].mxu0
        %v860 = vpop.f32.mrb[0].mxu0
        %v861 = vadd.f32 %v489, %v860
        %v862 = vpop.f32.mrb[0].mxu0
        %863 = vmatprep.mubr.bf16.mxu0 %v610
        %864 = vmatmul.mubr.bf16.gmra.mrb[0].mxu0 %v609
        %v865 = vpop.f32.mrb[0].mxu0
        %v866 = vadd.f32 %v494, %v865
        %v867 = vpop.f32.mrb[0].mxu0
        %v868 = vpop.f32.mrb[0].mxu0
        %v869 = vadd.f32 %v499, %v868
        %v870 = vpop.f32.mrb[0].mxu0
        %871 = vmatprep.mubr.bf16.mxu0 %v613
        %872 = vmatmul.mubr.bf16.gmra.mrb[0].mxu0 %v612
        %v873 = vpop.f32.mrb[0].mxu0
        %v874 = vadd.f32 %v504, %v873
        %v875 = vpop.f32.mrb[0].mxu0
        %v876 = vpop.f32.mrb[0].mxu0
        %v877 = vadd.f32 %v509, %v876
        %v878 = vpop.f32.mrb[0].mxu0
        %879 = vdwg.mxu0
        %880 = vmatprep.subr.bf16.mxu0 0
        %881 = vmatpush1.bf16.msra.mxu0 %v751
        %882 = vmatprep.subr.bf16.mxu0 0
        %883 = vmatpush1.bf16.msra.mxu0 %v752
        %884 = vmatprep.subr.bf16.mxu0 0
        %885 = vmatpush1.bf16.msra.mxu0 %v753
        %886 = vmatprep.subr.bf16.mxu0 0
        %887 = vmatpush1.bf16.msra.mxu0 %v754
        %888 = vmatprep.subr.bf16.mxu0 0
        %889 = vmatpush1.bf16.msra.mxu0 %v755
        %890 = vmatprep.subr.bf16.mxu0 0
        %891 = vmatpush1.bf16.msra.mxu0 %v756
        %892 = vmatprep.subr.bf16.mxu0 0
        %893 = vmatpush1.bf16.msra.mxu0 %v757
        %894 = vmatprep.subr.bf16.mxu0 0
        %895 = vmatpush1.bf16.msra.mxu0 %v758
        %896 = vmatprep.subr.bf16.mxu0 0
        %897 = vmatpush1.bf16.msra.mxu0 0
        %898 = vmatprep.subr.bf16.mxu0 0
        %899 = vmatpush1.bf16.msra.mxu0 0
        %900 = vmatprep.subr.bf16.mxu0 0
        %901 = vmatpush1.bf16.msra.mxu0 0
        %902 = vmatprep.subr.bf16.mxu0 0
        %903 = vmatpush1.bf16.msra.mxu0 0
        %904 = vmatprep.subr.bf16.mxu0 0
        %905 = vmatpush1.bf16.msra.mxu0 0
        %906 = vmatprep.subr.bf16.mxu0 0
        %907 = vmatpush1.bf16.msra.mxu0 0
        %908 = vmatprep.subr.bf16.mxu0 0
        %909 = vmatpush1.bf16.msra.mxu0 0
        %910 = vmatprep.subr.bf16.mxu0 0
        %911 = vmatpush1.bf16.msra.mxu0 0
        %912 = vmatprep.mubr.bf16.mxu0 0
        %913 = vmatmul.mubr.bf16.gmra.mrb[0].mxu0 %v593
        %v914 = vpop.f32.mrb[0].mxu0
        %v915 = vadd.f32 %v818, %v914
        %v916 = vpop.f32.mrb[0].mxu0
        %v917 = vpop.f32.mrb[0].mxu0
        %v918 = vadd.f32 %v821, %v917
        %v919 = vpop.f32.mrb[0].mxu0
        %920 = vmatprep.mubr.bf16.mxu0 0
        %921 = vmatmul.mubr.bf16.gmra.mrb[0].mxu0 %v596
        %v922 = vpop.f32.mrb[0].mxu0
        %v923 = vadd.f32 %v826, %v922
        %v924 = vpop.f32.mrb[0].mxu0
        %v925 = vpop.f32.mrb[0].mxu0
        %v926 = vadd.f32 %v829, %v925
        %v927 = vpop.f32.mrb[0].mxu0
        %928 = vmatprep.mubr.bf16.mxu0 0
        %929 = vmatmul.mubr.bf16.gmra.mrb[0].mxu0 %v599
        %v930 = vpop.f32.mrb[0].mxu0
        %v931 = vadd.f32 %v834, %v930
        %v932 = vpop.f32.mrb[0].mxu0
        %v933 = vpop.f32.mrb[0].mxu0
        %v934 = vadd.f32 %v837, %v933
        %v935 = vpop.f32.mrb[0].mxu0
        %936 = vmatprep.mubr.bf16.mxu0 0
        %937 = vmatmul.mubr.bf16.gmra.mrb[0].mxu0 %v602
        %v938 = vpop.f32.mrb[0].mxu0
        %v939 = vadd.f32 %v842, %v938
        %v940 = vpop.f32.mrb[0].mxu0
        %v941 = vpop.f32.mrb[0].mxu0
        %v942 = vadd.f32 %v845, %v941
        %v943 = vpop.f32.mrb[0].mxu0
        %944 = vmatprep.mubr.bf16.mxu0 0
        %945 = vmatmul.mubr.bf16.gmra.mrb[0].mxu0 %v605
        %v946 = vpop.f32.mrb[0].mxu0
        %v947 = vadd.f32 %v850, %v946
        %v948 = vpop.f32.mrb[0].mxu0
        %v949 = vpop.f32.mrb[0].mxu0
        %v950 = vadd.f32 %v853, %v949
        %v951 = vpop.f32.mrb[0].mxu0
        %952 = vmatprep.mubr.bf16.mxu0 0
        %953 = vmatmul.mubr.bf16.gmra.mrb[0].mxu0 %v608
        %v954 = vpop.f32.mrb[0].mxu0
        %v955 = vadd.f32 %v858, %v954
        %v956 = vpop.f32.mrb[0].mxu0
        %v957 = vpop.f32.mrb[0].mxu0
        %v958 = vadd.f32 %v861, %v957
        %v959 = vpop.f32.mrb[0].mxu0
        %960 = vmatprep.mubr.bf16.mxu0 0
        %961 = vmatmul.mubr.bf16.gmra.mrb[0].mxu0 %v611
        %v962 = vpop.f32.mrb[0].mxu0
        %v963 = vadd.f32 %v866, %v962
        %v964 = vpop.f32.mrb[0].mxu0
        %v965 = vpop.f32.mrb[0].mxu0
        %v966 = vadd.f32 %v869, %v965
        %v967 = vpop.f32.mrb[0].mxu0
        %968 = vmatprep.mubr.bf16.mxu0 0
        %969 = vmatmul.mubr.bf16.gmra.mrb[0].mxu0 %v614
        %v970 = vpop.f32.mrb[0].mxu0
        %v971 = vadd.f32 %v874, %v970
        %v972 = vpop.f32.mrb[0].mxu0
        %v973 = vpop.f32.mrb[0].mxu0
        %v974 = vadd.f32 %v877, %v973
        %v975 = vpop.f32.mrb[0].mxu0
        %976 = vdwg.mxu0
        %v977 = vxor.u32 %v915, 2147483648
        %v978 = vxor.u32 %v918, 2147483648
        %v979 = vxor.u32 %v923, 2147483648
        %v980 = vxor.u32 %v926, 2147483648
        %v981 = vxor.u32 %v931, 2147483648
        %v982 = vxor.u32 %v934, 2147483648
        %v983 = vxor.u32 %v939, 2147483648
        %v984 = vxor.u32 %v942, 2147483648
        %v985 = vxor.u32 %v947, 2147483648
        %v986 = vxor.u32 %v950, 2147483648
        %v987 = vxor.u32 %v955, 2147483648
        %v988 = vxor.u32 %v958, 2147483648
        %v989 = vmul.f32 %v977, 1.442695
        %v990 = vpow.pop %v989
        %v991 = vmul.f32 %v978, 1.442695
        %v992 = vpow.pop %v991
        %v993 = vmul.f32 %v979, 1.442695
        %v994 = vpow.pop %v993
        %v995 = vmul.f32 %v980, 1.442695
        %v996 = vpow.pop %v995
        %v997 = vmul.f32 %v981, 1.442695
        %v998 = vpow.pop %v997
        %v999 = vmul.f32 %v982, 1.442695
        %v1000 = vpow.pop %v999
        %v1001 = vmul.f32 %v983, 1.442695
        %v1002 = vpow.pop %v1001
        %v1003 = vmul.f32 %v984, 1.442695
        %v1004 = vpow.pop %v1003
        %v1005 = vmul.f32 %v985, 1.442695
        %v1006 = vpow.pop %v1005
        %v1007 = vmul.f32 %v986, 1.442695
        %v1008 = vpow.pop %v1007
        %v1009 = vmul.f32 %v987, 1.442695
        %v1010 = vpow.pop %v1009
        %v1011 = vmul.f32 %v988, 1.442695
        %v1012 = vpow.pop %v1011
        %v1013 = vadd.f32 %v990, 1.0
        %v1014 = vadd.f32 %v992, 1.0
        %v1015 = vadd.f32 %v994, 1.0
        %v1016 = vadd.f32 %v996, 1.0
        %v1017 = vadd.f32 %v998, 1.0
        %v1018 = vadd.f32 %v1000, 1.0
        %v1019 = vadd.f32 %v1002, 1.0
        %v1020 = vadd.f32 %v1004, 1.0
        %v1021 = vadd.f32 %v1006, 1.0
        %v1022 = vadd.f32 %v1008, 1.0
        %v1023 = vadd.f32 %v1010, 1.0
        %v1024 = vadd.f32 %v1012, 1.0
        %v1025 = vrcp.pop %v1013
        %v1026 = vmul.f32 1.0, %v1025
        %v1027 = vrcp.pop %v1014
        %v1028 = vmul.f32 1.0, %v1027
        %v1029 = vrcp.pop %v1015
        %v1030 = vmul.f32 1.0, %v1029
        %v1031 = vrcp.pop %v1016
        %v1032 = vmul.f32 1.0, %v1031
        %v1033 = vrcp.pop %v1017
        %v1034 = vmul.f32 1.0, %v1033
        %v1035 = vrcp.pop %v1018
        %v1036 = vmul.f32 1.0, %v1035
        %v1037 = vrcp.pop %v1019
        %v1038 = vmul.f32 1.0, %v1037
        %v1039 = vrcp.pop %v1020
        %v1040 = vmul.f32 1.0, %v1039
        %v1041 = vrcp.pop %v1021
        %v1042 = vmul.f32 1.0, %v1041
        %v1043 = vrcp.pop %v1022
        %v1044 = vmul.f32 1.0, %v1043
        %v1045 = vrcp.pop %v1023
        %v1046 = vmul.f32 1.0, %v1045
        %v1047 = vrcp.pop %v1024
        %v1048 = vmul.f32 1.0, %v1047
        %v1049 = vtanh.pop %v963
        %v1050 = vtanh.pop %v966
        %v1051 = vtanh.pop %v971
        %v1052 = vtanh.pop %v974
        %v1053 = vld [vmem:[%s299] sm:$0xff]
        %v1054 = vld [vmem:[%s299 + $0x8] sm:$0xff]
        %v1055 = vld [vmem:[%s299 + $0x10] sm:$0xff]
        %v1056 = vld [vmem:[%s299 + $0x18] sm:$0xff]
        %v1057 = vmul.f32 %v1034, %v1053
        %v1058 = vmul.f32 %v1036, %v1054
        %v1059 = vmul.f32 %v1038, %v1055
        %v1060 = vmul.f32 %v1040, %v1056
        %v1061 = vmul.f32 %v1026, %v1049
        %v1062 = vmul.f32 %v1028, %v1050
        %v1063 = vmul.f32 %v1030, %v1051
        %v1064 = vmul.f32 %v1032, %v1052
        %v1065 = vadd.f32 %v1057, %v1061
        %v1066 = vadd.f32 %v1058, %v1062
        %v1067 = vadd.f32 %v1059, %v1063
        %v1068 = vadd.f32 %v1060, %v1064
        %v1069 = vtanh.pop %v1065
        %v1070 = vtanh.pop %v1066
        %v1071 = vtanh.pop %v1067
        %v1072 = vtanh.pop %v1068
        %v1073 = vmul.f32 %v1042, %v1069
        %v1074 = vmul.f32 %v1044, %v1070
        %v1075 = vmul.f32 %v1046, %v1071
        %v1076 = vmul.f32 %v1048, %v1072
        %1077 = vst [vmem:[%s326] sm:$0xff] %v1073
        %1078 = vst [vmem:[%s326 + $0x8] sm:$0xff] %v1074
        %1079 = vst [vmem:[%s326 + $0x10] sm:$0xff] %v1075
        %1080 = vst [vmem:[%s326 + $0x18] sm:$0xff] %v1076
        %1081 = vst [vmem:[%s333] sm:$0xff] %v1065
        %1082 = vst [vmem:[%s333 + $0x8] sm:$0xff] %v1066
        %1083 = vst [vmem:[%s333 + $0x10] sm:$0xff] %v1067
        %1084 = vst [vmem:[%s333 + $0x18] sm:$0xff] %v1068
        %s1085 = sand.u32 %s129, 1
        %s1086 = scalar_lea.sflag [#allocation4], %s1085
        %s1087 = sand.u32 %s129, 1
        %s1088 = smul.addr %s1087, 32
        %s1089 = scalar_lea.vmem [#allocation8], %s1088
        %s1090 = sand.u32 %s155, 1
        %s1091 = scalar_lea.sflag [#allocation10], %s1090
        %s1092 = sand.u32 %s155, 1
        %s1093 = smul.addr %s1092, 32
        %s1094 = scalar_lea.vmem [#allocation9], %s1093
        // Predicated region
        $region83: #{tpu_custom_call.1} parent=69 // pred_check
          %p1095 = pneg %p139
        $region84: #{tpu_custom_call.1} parent=69 // pred_check_branch
          %1097 = sbr.rel (%p1095) target = $region86
        $region85: #{tpu_custom_call.1} parent=69 // pred_region
          %s1099 = ssub.s32 512, 512
          %1100 = vsyncadd %s1086, %s1099
          %s1101 = smul.addr %s27, 128
          %s1102 = scalar_lea.hbm %s4, %s1101
          %s1103 = sshll.u32 %s1089, 4
          %s1104 = int_to_ptr.vmem [resolvable:$true] %s1103
          %1109 = dma.vmem_to_hbm [thread:$0]  %s1104, 512, %s1102, %s1086, 128, 512, 8
        $region86: #{tpu_custom_call.1} parent=69 // pred_fallthru
          _
        // Predicated region
        $region87: #{tpu_custom_call.1} parent=69 // pred_check
          %p1110 = pneg %p165
        $region88: #{tpu_custom_call.1} parent=69 // pred_check_branch
          %1112 = sbr.rel (%p1110) target = $region90
        $region89: #{tpu_custom_call.1} parent=69 // pred_region
          %s1114 = ssub.s32 512, 512
          %1115 = vsyncadd %s1091, %s1114
          %s1116 = smul.addr %s27, 128
          %s1117 = scalar_lea.hbm %s5, %s1116
          %s1118 = sshll.u32 %s1094, 4
          %s1119 = int_to_ptr.vmem [resolvable:$true] %s1118
          %1124 = dma.vmem_to_hbm [thread:$0]  %s1119, 512, %s1117, %s1091, 128, 512, 8
        $region90: #{tpu_custom_call.1} parent=69 // pred_fallthru
          _
      $region70: #{tpu_custom_call.1} parent=5 // pred_fallthru
        _
      %p1125 = scmp.le.s32.totalorder 2, %s22
      // Predicated region
      $region91: #{tpu_custom_call.1} parent=5 // pred_check
        %p1126 = pneg %p1125
      $region92: #{tpu_custom_call.1} parent=5 // pred_check_branch
        %1128 = sbr.rel (%p1126) target = $region94
      $region93: #{tpu_custom_call.1} parent=5 // pred_region
        %s1129 = ssub.s32 %s22, 2
        // Predicated region
        $region95: #{tpu_custom_call.1} parent=93 // pred_check
          %p1130 = pneg %p145
        $region96: #{tpu_custom_call.1} parent=93 // pred_check_branch
          %1132 = sbr.rel (%p1130) target = $region98
        $region97: #{tpu_custom_call.1} parent=93 // pred_region
          %s1133 = sand.u32 %s130, 1
          %s1134 = scalar_lea.sflag [#allocation4], %s1133
          %s1135 = sand.u32 %s130, 1
          %s1136 = smul.addr %s1135, 32
          %s1137 = scalar_lea.vmem [#allocation8], %s1136
          %1138 = dma.done %s1134, 512
        $region98: #{tpu_custom_call.1} parent=93 // pred_fallthru
          _
        // Predicated region
        $region99: #{tpu_custom_call.1} parent=93 // pred_check
          %p1139 = pneg %p171
        $region100: #{tpu_custom_call.1} parent=93 // pred_check_branch
          %1141 = sbr.rel (%p1139) target = $region102
        $region101: #{tpu_custom_call.1} parent=93 // pred_region
          %s1142 = sand.u32 %s156, 1
          %s1143 = scalar_lea.sflag [#allocation10], %s1142
          %s1144 = sand.u32 %s156, 1
          %s1145 = smul.addr %s1144, 32
          %s1146 = scalar_lea.vmem [#allocation9], %s1145
          %1147 = dma.done %s1143, 512
        $region102: #{tpu_custom_call.1} parent=93 // pred_fallthru
          _
      $region94: #{tpu_custom_call.1} parent=5 // pred_fallthru
        _
    $region6: #{tpu_custom_call.1} parent=1 // loop_footer
      %s26 = sadd.s32 1, %s22
    $region7: #{tpu_custom_call.1} parent=1 // loop_footer_branch
      %21 = sbr.rel target = $region3
    $region8: #{tpu_custom_call.1} parent=1 // loop_exit
      _
    %1148 = vsyncpa [#allocation3], 1
    %s1149 = scalar_lea.sflag [#allocation3], 1
    %1150 = vsyncpa %s1149, 1
    %1151 = vsyncpa [#allocation6], 1
    %1152 = vsyncpa [#allocation4], 1
    %s1153 = scalar_lea.sflag [#allocation4], 1
    %1154 = vsyncpa %s1153, 1
    %1155 = vsyncpa [#allocation10], 1
    %s1156 = scalar_lea.sflag [#allocation10], 1
    %1157 = vsyncpa %s1156, 1

</llo_original>
